<compile_context>
chip_gen: v5e
topology: v5e:2x2
jax: 0.10.0
libtpu: 0.0.40
codegen_flags: <defaults>
</compile_context>

<pallas_src>
import functools

import jax
import jax.numpy as jnp
from jax import lax
from jax.experimental import pallas as pl
from jax.experimental.pallas import tpu as pltpu


def _dw_pw_compute(xf, wdw_ref, wpw_ref, bias_ref, o_ref, *,
                   kernel_size, tl, use_mxu, mxu_dtype, precision):
    # xf      : (C_in, >= tl + K - 1) f32 input window (channels on sublanes, length on lanes)
    # wdw_ref : (C_in, K)      depthwise weights
    # wpw_ref : (C_out, C_in)  pointwise weights
    # bias_ref: (C_out, 1)     fused bias  (Wpw @ b_dw + b_pw), f32
    # o_ref   : (1, C_out, tl) output tile (length on lanes -> lane-dense stores)
    wdw = wdw_ref[...].astype(jnp.float32)                         # (C_in, K)

    # Depthwise conv: K shifted per-channel multiply-adds on the VPU. The unaligned
    # lane-offset slices lower to XLU rotates which overlap the VPU MACs (fine for small K).
    acc = xf[:, 0:tl] * wdw[:, 0:1]
    for k in range(1, kernel_size):                                # K tiny -> static unroll
        acc = acc + xf[:, k:k + tl] * wdw[:, k:k + 1]              # (C_in, tl)

    # Pointwise (1x1) conv == channel mix: out[o, l] = sum_c wpw[o, c] * acc[c, l].
    if use_mxu:
        # Contraction over C_in rides the MXU (vector-extended slot), keeping the VALU free
        # for the depthwise taps. f32 operands use explicit HIGHEST precision; bf16 inputs
        # use the native bf16 path (f32 accumulation).
        out = jnp.dot(wpw_ref[...].astype(mxu_dtype), acc.astype(mxu_dtype),
                      preferred_element_type=jnp.float32, precision=precision)
    else:
        # Tiny channel mix: unrolled VPU broadcast-MACs.
        wpw = wpw_ref[...].astype(jnp.float32)                     # (C_out, C_in)
        out = jnp.zeros((wpw.shape[0], tl), dtype=jnp.float32)
        for ci in range(wpw.shape[1]):
            out = out + wpw[:, ci:ci + 1] * acc[ci:ci + 1, :]

    o_ref[0] = (out + bias_ref[...]).astype(o_ref.dtype)           # fused (dw + pw) bias


def _sepconv1d_kernel_single(x_ref, wdw_ref, wpw_ref, bias_ref, o_ref, **params):
    # Single length tile: one full-extent (1, C_in, L) block; no halo operand, no concat,
    # x is read from HBM exactly once.
    _dw_pw_compute(x_ref[0].astype(jnp.float32),
                   wdw_ref, wpw_ref, bias_ref, o_ref, **params)


def _sepconv1d_kernel_tiled(x_cur_ref, x_halo_ref, wdw_ref, wpw_ref, bias_ref, o_ref, **params):
    # x_cur_ref : (1, C_in, TL)  current length tile
    # x_halo_ref: (1, C_in, 128) continuation of the tile (halo for the last K-1 taps)
    xf = jnp.concatenate([x_cur_ref[0], x_halo_ref[0]], axis=-1).astype(jnp.float32)
    _dw_pw_compute(xf, wdw_ref, wpw_ref, bias_ref, o_ref, **params)


def _auto_tile_l(c_in, c_out, itemsize, budget_bytes=32 * 1024 * 1024):
    """Largest lane-aligned length tile whose per-step working set fits the VMEM budget."""
    for tl in (2048, 1024, 512, 256, 128):
        need = (2 * c_in * (tl + 128) * itemsize          # input tile + halo, double buffered
                + 2 * c_out * tl * itemsize               # output tile, double buffered
                + (c_in * (tl + 128) + c_in * tl + c_out * tl) * 4)   # f32 xf/acc/out
        if need <= budget_bytes:
            return tl
    return 128


def separable_conv1d(x_ncl, w_dw, b_dw, w_pw, b_pw, *, kernel_size, tile_l=None):
    """x_ncl: (N, C_in, L) PyTorch NCL layout (kept end-to-end; no transposes).
       w_dw : (C_in, K)     depthwise weights  (PyTorch (C_in, 1, K) squeezed)
       b_dw : (C_in,)
       w_pw : (C_out, C_in) pointwise weights  (PyTorch (C_out, C_in, 1) squeezed)
       b_pw : (C_out,)
       returns (N, C_out, L_out), L_out = L - K + 1.
    """
    n, c_in, l = x_ncl.shape
    c_out = w_pw.shape[0]
    k = kernel_size
    l_out = l - k + 1
    assert l_out >= 1, "length too short for the kernel size"
    itemsize = jnp.dtype(x_ncl.dtype).itemsize

    tl = tile_l if tile_l is not None else _auto_tile_l(c_in, c_out, itemsize)
    assert tl % 128 == 0 and tl >= 128, "length tile must be lane-aligned"

    # v7x megacore: with N == 1 make sure the length axis yields >= 2 parallel grid steps
    # so both TensorCores get work (no-op on v5e/v6e single-TC chips).
    if n == 1 and l_out >= 256:
        half = -(-l_out // 2)
        tl = min(tl, 128 * (-(-half // 128)))

    # Fold the depthwise bias into the pointwise bias (pointwise conv is linear):
    #   Wpw (dw + b_dw) + b_pw = Wpw dw + (Wpw b_dw + b_pw)
    b_eff = (jnp.dot(w_pw.astype(jnp.float32), b_dw.astype(jnp.float32).reshape(c_in, 1))
             + b_pw.astype(jnp.float32).reshape(c_out, 1))          # (C_out, 1) f32

    # Slot balance: the VALU already does K*C_in*TL depthwise MACs; push the channel mix to
    # the MXU whenever C_in*C_out is non-trivial, keep tiny mixes on the VPU.
    use_mxu = (c_in >= 8) and (c_in * c_out >= 64)
    mxu_dtype = jnp.bfloat16 if x_ncl.dtype == jnp.bfloat16 else jnp.float32
    precision = None if mxu_dtype == jnp.bfloat16 else lax.Precision.HIGHEST

    flops = 2 * n * l_out * c_in * (k + c_out)            # depthwise + pointwise MACs
    param_bytes = (c_in * k + c_out * c_in + c_out) * 4

    if l_out <= tl:
        # ---------------- single length tile: no-halo kernel variant --------------------
        kern = functools.partial(_sepconv1d_kernel_single, kernel_size=k, tl=l_out,
                                 use_mxu=use_mxu, mxu_dtype=mxu_dtype, precision=precision)
        grid = (n,)
        in_specs = [
            pl.BlockSpec((1, c_in, l), lambda b: (b, 0, 0)),
            pl.BlockSpec((c_in, k), lambda b: (0, 0)),
            pl.BlockSpec((c_out, c_in), lambda b: (0, 0)),
            pl.BlockSpec((c_out, 1), lambda b: (0, 0)),
        ]
        out_specs = pl.BlockSpec((1, c_out, l_out), lambda b: (b, 0, 0))
        operands = (x_ncl, w_dw, w_pw, b_eff)
        dim_sem = ("parallel",)
        bytes_accessed = (n * c_in * l + n * c_out * l_out) * itemsize + param_bytes
    else:
        # ------------- tiled along length: TL main block + 128-lane halo block ----------
        assert k - 1 <= 128, "halo block (128 lanes) must cover K-1"
        num_t = -(-l_out // tl)
        halo_stride = tl // 128                       # halo block index step (128-wide blocks)
        last_halo = (l - 1) // 128                    # last in-bounds 128-block of x
        kern = functools.partial(_sepconv1d_kernel_tiled, kernel_size=k, tl=tl,
                                 use_mxu=use_mxu, mxu_dtype=mxu_dtype, precision=precision)
        grid = (n, num_t)
        in_specs = [
            pl.BlockSpec((1, c_in, tl), lambda b, t: (b, 0, t)),
            # Halo = the 128 input columns that start at the next tile. The clamp keeps the
            # DMA in-bounds on the last tile; since TL is a multiple of 128, the clamp only
            # activates when (t+1)*TL >= L, in which case every output column that would
            # read a halo lane is >= L_out and is masked on the partial output store.
            pl.BlockSpec((1, c_in, 128),
                         lambda b, t: (b, 0, jnp.minimum((t + 1) * halo_stride, last_halo))),
            pl.BlockSpec((c_in, k), lambda b, t: (0, 0)),
            pl.BlockSpec((c_out, c_in), lambda b, t: (0, 0)),
            pl.BlockSpec((c_out, 1), lambda b, t: (0, 0)),
        ]
        out_specs = pl.BlockSpec((1, c_out, tl), lambda b, t: (b, 0, t))
        operands = (x_ncl, x_ncl, w_dw, w_pw, b_eff)
        dim_sem = ("parallel", "parallel")
        bytes_accessed = ((n * c_in * l + n * num_t * c_in * 128   # includes halo re-reads
                           + n * c_out * l_out) * itemsize + param_bytes)

    return pl.pallas_call(
        kern,
        out_shape=jax.ShapeDtypeStruct((n, c_out, l_out), x_ncl.dtype),
        grid_spec=pltpu.PrefetchScalarGridSpec(
            num_scalar_prefetch=0, grid=grid, in_specs=in_specs, out_specs=out_specs),
        compiler_params=pltpu.CompilerParams(
            dimension_semantics=dim_sem,
            vmem_limit_bytes=48 * 1024 * 1024),       # < v7x's 64 MiB physical VMEM
        cost_estimate=pl.CostEstimate(flops=flops, transcendentals=0,
                                      bytes_accessed=bytes_accessed),
    )(*operands)


def _reference(x, w_dw, b_dw, w_pw, b_pw, *, kernel_size):
    """Pure-JAX reference (same math as the PyTorch module) for correctness checking."""
    l_out = x.shape[-1] - kernel_size + 1
    xf = x.astype(jnp.float32)
    dw = jnp.zeros(x.shape[:2] + (l_out,), dtype=jnp.float32)
    for k in range(kernel_size):
        dw = dw + xf[:, :, k:k + l_out] * w_dw[:, k].astype(jnp.float32)[None, :, None]
    dw = dw + b_dw.astype(jnp.float32)[None, :, None]
    out = jnp.einsum("oc,ncl->nol", w_pw.astype(jnp.float32), dw,
                     precision=lax.Precision.HIGHEST)
    out = out + b_pw.astype(jnp.float32)[None, :, None]
    return out.astype(x.dtype)


if __name__ == "__main__":
    def run_case(n, c_in, c_out, length, ksz, key, tol=1e-4):
        k1, k2, k3, k4, k5 = jax.random.split(key, 5)
        x = jax.random.normal(k1, (n, c_in, length), dtype=jnp.float32)
        w_dw = jax.random.normal(k2, (c_in, ksz), dtype=jnp.float32) * 0.2
        b_dw = jax.random.normal(k3, (c_in,), dtype=jnp.float32) * 0.1
        w_pw = jax.random.normal(k4, (c_out, c_in), dtype=jnp.float32) * 0.2
        b_pw = jax.random.normal(k5, (c_out,), dtype=jnp.float32) * 0.1

        out = jax.block_until_ready(
            separable_conv1d(x, w_dw, b_dw, w_pw, b_pw, kernel_size=ksz))
        ref = _reference(x, w_dw, b_dw, w_pw, b_pw, kernel_size=ksz)
        assert out.shape == (n, c_out, length - ksz + 1), out.shape
        err = float(jnp.max(jnp.abs(out - ref)))
        assert jnp.allclose(out, ref, atol=tol, rtol=tol), err

    key = jax.random.PRNGKey(0)
    ka, kb, kc = jax.random.split(key, 3)
    # Module-default small case: single-tile / no-halo kernel, VPU pointwise path.
    run_case(2, 4, 8, 16, 3, ka)
    # N == 1 forces a >= 2-wide length grid (v7x megacore): tiled path with partial last
    # blocks (l_out not divisible by TL), halo clamp, MXU pointwise at HIGHEST precision.
    run_case(1, 32, 16, 700, 3, kb)
    # Length > auto tile with K=5: multi-tile halo stitching over both batch and length.
    run_case(2, 8, 16, 3000, 5, kc)

    print("KERNEL_OK")
</pallas_src>

<mosaic_0001>
module attributes {stable_mosaic.version = 11 : i64} {
  func.func @_sepconv1d_kernel_single(%arg0: i32, %arg1: memref<1x4x16xf32, #tpu.memory_space<vmem>>, %arg2: memref<4x3xf32, #tpu.memory_space<vmem>>, %arg3: memref<8x4xf32, #tpu.memory_space<vmem>>, %arg4: memref<8x1xf32, #tpu.memory_space<vmem>>, %arg5: memref<1x8x14xf32, #tpu.memory_space<vmem>>) attributes {dimension_semantics = [#tpu.dimension_semantics<parallel>], iteration_bounds = array<i64: 2>, scalar_prefetch = 0 : i64, scratch_operands = 0 : i64, tpu.core_type = #tpu.core_type<tc>, window_params = [{transform_indices = @transform_0, window_bounds = array<i64: 1, 4, 16>}, {pipeline_mode = #tpu.pipeline_mode<synchronous>, transform_indices = @transform_1, window_bounds = array<i64: 4, 3>}, {pipeline_mode = #tpu.pipeline_mode<synchronous>, transform_indices = @transform_2, window_bounds = array<i64: 8, 4>}, {pipeline_mode = #tpu.pipeline_mode<synchronous>, transform_indices = @transform_3, window_bounds = array<i64: 8, 1>}, {transform_indices = @transform_4, window_bounds = array<i64: 1, 8, 14>}]} {
    %c0 = arith.constant 0 : index
    %c0_0 = arith.constant 0 : index
    %c0_1 = arith.constant 0 : index
    %0 = vector.load %arg1[%c0, %c0_0, %c0_1] : memref<1x4x16xf32, #tpu.memory_space<vmem>>, vector<1x4x16xf32>
    %1 = vector.shape_cast %0 : vector<1x4x16xf32> to vector<4x16xf32>
    %c0_2 = arith.constant 0 : index
    %c0_3 = arith.constant 0 : index
    %2 = vector.load %arg2[%c0_2, %c0_3] : memref<4x3xf32, #tpu.memory_space<vmem>>, vector<4x3xf32>
    %3 = vector.extract_strided_slice %1 {offsets = [0, 0], sizes = [4, 14], strides = [1, 1]} : vector<4x16xf32> to vector<4x14xf32>
    %4 = vector.extract_strided_slice %2 {offsets = [0, 0], sizes = [4, 1], strides = [1, 1]} : vector<4x3xf32> to vector<4x1xf32>
    %5 = vector.broadcast %4 : vector<4x1xf32> to vector<4x14xf32>
    %6 = arith.mulf %3, %5 : vector<4x14xf32>
    %7 = vector.extract_strided_slice %1 {offsets = [0, 1], sizes = [4, 14], strides = [1, 1]} : vector<4x16xf32> to vector<4x14xf32>
    %8 = vector.extract_strided_slice %2 {offsets = [0, 1], sizes = [4, 1], strides = [1, 1]} : vector<4x3xf32> to vector<4x1xf32>
    %9 = vector.broadcast %8 : vector<4x1xf32> to vector<4x14xf32>
    %10 = arith.mulf %7, %9 : vector<4x14xf32>
    %11 = arith.addf %6, %10 : vector<4x14xf32>
    %12 = vector.extract_strided_slice %1 {offsets = [0, 2], sizes = [4, 14], strides = [1, 1]} : vector<4x16xf32> to vector<4x14xf32>
    %13 = vector.extract_strided_slice %2 {offsets = [0, 2], sizes = [4, 1], strides = [1, 1]} : vector<4x3xf32> to vector<4x1xf32>
    %14 = vector.broadcast %13 : vector<4x1xf32> to vector<4x14xf32>
    %15 = arith.mulf %12, %14 : vector<4x14xf32>
    %16 = arith.addf %11, %15 : vector<4x14xf32>
    %c0_4 = arith.constant 0 : index
    %c0_5 = arith.constant 0 : index
    %17 = vector.load %arg3[%c0_4, %c0_5] : memref<8x4xf32, #tpu.memory_space<vmem>>, vector<8x4xf32>
    %cst = arith.constant 0.000000e+00 : f32
    %18 = vector.broadcast %cst : f32 to vector<8x14xf32>
    %19 = vector.extract_strided_slice %17 {offsets = [0, 0], sizes = [8, 1], strides = [1, 1]} : vector<8x4xf32> to vector<8x1xf32>
    %20 = vector.extract_strided_slice %16 {offsets = [0, 0], sizes = [1, 14], strides = [1, 1]} : vector<4x14xf32> to vector<1x14xf32>
    %21 = vector.broadcast %19 : vector<8x1xf32> to vector<8x14xf32>
    %22 = vector.broadcast %20 : vector<1x14xf32> to vector<8x14xf32>
    %23 = arith.mulf %21, %22 : vector<8x14xf32>
    %24 = arith.addf %18, %23 : vector<8x14xf32>
    %25 = vector.extract_strided_slice %17 {offsets = [0, 1], sizes = [8, 1], strides = [1, 1]} : vector<8x4xf32> to vector<8x1xf32>
    %26 = vector.extract_strided_slice %16 {offsets = [1, 0], sizes = [1, 14], strides = [1, 1]} : vector<4x14xf32> to vector<1x14xf32>
    %27 = vector.broadcast %25 : vector<8x1xf32> to vector<8x14xf32>
    %28 = vector.broadcast %26 : vector<1x14xf32> to vector<8x14xf32>
    %29 = arith.mulf %27, %28 : vector<8x14xf32>
    %30 = arith.addf %24, %29 : vector<8x14xf32>
    %31 = vector.extract_strided_slice %17 {offsets = [0, 2], sizes = [8, 1], strides = [1, 1]} : vector<8x4xf32> to vector<8x1xf32>
    %32 = vector.extract_strided_slice %16 {offsets = [2, 0], sizes = [1, 14], strides = [1, 1]} : vector<4x14xf32> to vector<1x14xf32>
    %33 = vector.broadcast %31 : vector<8x1xf32> to vector<8x14xf32>
    %34 = vector.broadcast %32 : vector<1x14xf32> to vector<8x14xf32>
    %35 = arith.mulf %33, %34 : vector<8x14xf32>
    %36 = arith.addf %30, %35 : vector<8x14xf32>
    %37 = vector.extract_strided_slice %17 {offsets = [0, 3], sizes = [8, 1], strides = [1, 1]} : vector<8x4xf32> to vector<8x1xf32>
    %38 = vector.extract_strided_slice %16 {offsets = [3, 0], sizes = [1, 14], strides = [1, 1]} : vector<4x14xf32> to vector<1x14xf32>
    %39 = vector.broadcast %37 : vector<8x1xf32> to vector<8x14xf32>
    %40 = vector.broadcast %38 : vector<1x14xf32> to vector<8x14xf32>
    %41 = arith.mulf %39, %40 : vector<8x14xf32>
    %42 = arith.addf %36, %41 : vector<8x14xf32>
    %c0_6 = arith.constant 0 : index
    %c0_7 = arith.constant 0 : index
    %43 = vector.load %arg4[%c0_6, %c0_7] : memref<8x1xf32, #tpu.memory_space<vmem>>, vector<8x1xf32>
    %44 = vector.broadcast %43 : vector<8x1xf32> to vector<8x14xf32>
    %45 = arith.addf %42, %44 : vector<8x14xf32>
    %c0_8 = arith.constant 0 : index
    %c0_9 = arith.constant 0 : index
    %c0_10 = arith.constant 0 : index
    %46 = vector.load %arg5[%c0_8, %c0_9, %c0_10] : memref<1x8x14xf32, #tpu.memory_space<vmem>>, vector<1x8x14xf32>
    %47 = vector.shape_cast %46 : vector<1x8x14xf32> to vector<8x14xf32>
    %48 = vector.shape_cast %45 : vector<8x14xf32> to vector<1x8x14xf32>
    tpu.vector_store %arg5[%c0_8, %c0_9, %c0_10], %48 {strides = array<i32>} : memref<1x8x14xf32, #tpu.memory_space<vmem>>, vector<1x8x14xf32>,
    return
  }
  func.func @transform_0(%arg0: i32) -> (i32, i32, i32) {
    %c0_i32 = arith.constant 0 : i32
    %c0_i32_0 = arith.constant 0 : i32
    %c0_i32_1 = arith.constant 0 : i32
    return %arg0, %c0_i32, %c0_i32_0 : i32, i32, i32
  }
  func.func @transform_1(%arg0: i32) -> (i32, i32) {
    %c0_i32 = arith.constant 0 : i32
    %c0_i32_0 = arith.constant 0 : i32
    %c0_i32_1 = arith.constant 0 : i32
    return %c0_i32, %c0_i32_0 : i32, i32
  }
  func.func @transform_2(%arg0: i32) -> (i32, i32) {
    %c0_i32 = arith.constant 0 : i32
    %c0_i32_0 = arith.constant 0 : i32
    %c0_i32_1 = arith.constant 0 : i32
    return %c0_i32, %c0_i32_0 : i32, i32
  }
  func.func @transform_3(%arg0: i32) -> (i32, i32) {
    %c0_i32 = arith.constant 0 : i32
    %c0_i32_0 = arith.constant 0 : i32
    %c0_i32_1 = arith.constant 0 : i32
    return %c0_i32, %c0_i32_0 : i32, i32
  }
  func.func @transform_4(%arg0: i32) -> (i32, i32, i32) {
    %c0_i32 = arith.constant 0 : i32
    %c0_i32_0 = arith.constant 0 : i32
    %c0_i32_1 = arith.constant 0 : i32
    return %arg0, %c0_i32, %c0_i32_0 : i32, i32, i32
  }
}

</mosaic_0001>

<llo_original>
// kernel: tpu_custom_call.1
$region0: #{tpu_custom_call.1}
  #allocation0 [shape = 'u32[]', space=smem, size = 0x4, offset = 0x4, fixed_abs, tag = 'smem constant byte address 0x4 - core index']
  #allocation1 [shape = 'u32[72,128]{1,0:T(1,128)}', space=vmem, size = 0x9000, scoped, tag = 'internal scratch']
  %s0 = inlined_call_operand.vmem [shape: f32[2,4,16], index: 0, kind: input, shape index: {}]
  %s1 = inlined_call_operand.vmem [shape: f32[4,3], index: 1, kind: input, shape index: {}]
  %s2 = inlined_call_operand.vmem [shape: f32[8,4], index: 2, kind: input, shape index: {}]
  %s3 = inlined_call_operand.vmem [shape: f32[8,1], index: 3, kind: input, shape index: {}]
  %s4 = inlined_call_operand.hbm [shape: f32[2,8,14], index: 4, kind: output, shape index: {}]
  %s5 = sld [smem:[#allocation0]]
  $region49: #{tpu_custom_call.1} parent=0
    _
  %s7 = ssub.s32 1, %s5
  %s8 = scalar_select 0, %s7, %s5
  $region1: #{tpu_custom_call.1} parent=0
    #allocation2 [shape = 'u8[8192]{0}', space=vmem, size = 0x2000, scoped, tag = 'output window, operand 0']
    #allocation3 [shape = 's32[2]{0}', space=sflag, size = 0x8, scoped, tag = 'scoped memory for tpu_custom_call.1']
    %9 = vsyncpa [#allocation3], 0
    %s10 = scalar_lea.sflag [#allocation3], 1
    %11 = vsyncpa %s10, 0
    loop: start=0, step=1, limit=4
    $region2: #{tpu_custom_call.1} parent=1 // loop_pre_header
      _
    $region3: #{tpu_custom_call.1} parent=1 // loop_header
      %s13 = sphi 0, %s17
      %p14 = scmp.ge.s32.totalorder %s13, 4
      %s23 = sphi 0, %s25
      %s26 = sphi 0, %s23
      %s27 = sphi 0, %s26
      %s43 = sphi 0, %s27
      %s47 = sphi 0, %s47
      %s49 = sphi 0, %s47
      %s50 = sphi 0, %s49
      %s64 = sphi 0, %s50
      %s68 = sphi 0, %s68
      %s70 = sphi 0, %s68
      %s71 = sphi 0, %s70
      %s85 = sphi 0, %s71
      %s89 = sphi 0, %s89
      %s91 = sphi 0, %s89
      %s92 = sphi 0, %s91
      %s106 = sphi 0, %s92
      %s112 = sphi 0, %s114
      %s115 = sphi 0, %s112
      %s116 = sphi 0, %s115
      %s132 = sphi 0, %s116
    $region4: #{tpu_custom_call.1} parent=1 // loop_header_branch
      %16 = sbr.rel (%p14) target = $region8
    $region5: #{tpu_custom_call.1} parent=1 // loop_body
      %s18 = ssub.s32 %s13, 1
      %s19 = ssub.s32 %s13, 2
      %s20 = sadd.s32 %s13, 1
      %s21 = ssub.s32 %s13, %s20
      %p22 = scmp.eq.s32.totalorder %s21, 0
      %s24 = sadd.s32 %s23, 1
      %s25 = scalar_select %p22, %s23, %s24
      %p28 = pneg %p22
      %p29 = scmp.eq.s32.totalorder %s13, 1
      %p30 = por %p28, %p29
      %p31 = scmp.ne.s32.totalorder %s23, %s26
      %p32 = scmp.eq.s32.totalorder %s13, 0
      %p33 = por %p31, %p32
      %p34 = scmp.ne.s32.totalorder %s23, %s26
      %p35 = scmp.eq.s32.totalorder %s18, 1
      %p36 = por %p34, %p35
      %p37 = scmp.ne.s32.totalorder %s26, %s27
      %p38 = scmp.eq.s32.totalorder %s18, 0
      %p39 = por %p37, %p38
      %p40 = scmp.ne.s32.totalorder %s26, %s27
      %p41 = scmp.eq.s32.totalorder %s19, 1
      %p42 = por %p40, %p41
      %p44 = scmp.ne.s32.totalorder %s27, %s43
      %p45 = scmp.eq.s32.totalorder %s19, 0
      %p46 = por %p44, %p45
      %s48 = sadd.s32 %s47, 1
      %p51 = scmp.eq.s32.totalorder %s13, 1
      %p52 = scmp.ne.s32.totalorder %s47, %s49
      %p53 = scmp.eq.s32.totalorder %s13, 0
      %p54 = por %p52, %p53
      %p55 = scmp.ne.s32.totalorder %s47, %s49
      %p56 = scmp.eq.s32.totalorder %s18, 1
      %p57 = por %p55, %p56
      %p58 = scmp.ne.s32.totalorder %s49, %s50
      %p59 = scmp.eq.s32.totalorder %s18, 0
      %p60 = por %p58, %p59
      %p61 = scmp.ne.s32.totalorder %s49, %s50
      %p62 = scmp.eq.s32.totalorder %s19, 1
      %p63 = por %p61, %p62
      %p65 = scmp.ne.s32.totalorder %s50, %s64
      %p66 = scmp.eq.s32.totalorder %s19, 0
      %p67 = por %p65, %p66
      %s69 = sadd.s32 %s68, 1
      %p72 = scmp.eq.s32.totalorder %s13, 1
      %p73 = scmp.ne.s32.totalorder %s68, %s70
      %p74 = scmp.eq.s32.totalorder %s13, 0
      %p75 = por %p73, %p74
      %p76 = scmp.ne.s32.totalorder %s68, %s70
      %p77 = scmp.eq.s32.totalorder %s18, 1
      %p78 = por %p76, %p77
      %p79 = scmp.ne.s32.totalorder %s70, %s71
      %p80 = scmp.eq.s32.totalorder %s18, 0
      %p81 = por %p79, %p80
      %p82 = scmp.ne.s32.totalorder %s70, %s71
      %p83 = scmp.eq.s32.totalorder %s19, 1
      %p84 = por %p82, %p83
      %p86 = scmp.ne.s32.totalorder %s71, %s85
      %p87 = scmp.eq.s32.totalorder %s19, 0
      %p88 = por %p86, %p87
      %s90 = sadd.s32 %s89, 1
      %p93 = scmp.eq.s32.totalorder %s13, 1
      %p94 = scmp.ne.s32.totalorder %s89, %s91
      %p95 = scmp.eq.s32.totalorder %s13, 0
      %p96 = por %p94, %p95
      %p97 = scmp.ne.s32.totalorder %s89, %s91
      %p98 = scmp.eq.s32.totalorder %s18, 1
      %p99 = por %p97, %p98
      %p100 = scmp.ne.s32.totalorder %s91, %s92
      %p101 = scmp.eq.s32.totalorder %s18, 0
      %p102 = por %p100, %p101
      %p103 = scmp.ne.s32.totalorder %s91, %s92
      %p104 = scmp.eq.s32.totalorder %s19, 1
      %p105 = por %p103, %p104
      %p107 = scmp.ne.s32.totalorder %s92, %s106
      %p108 = scmp.eq.s32.totalorder %s19, 0
      %p109 = por %p107, %p108
      %s110 = ssub.s32 %s13, %s20
      %p111 = scmp.eq.s32.totalorder %s110, 0
      %s113 = sadd.s32 %s112, 1
      %s114 = scalar_select %p111, %s112, %s113
      %p117 = pneg %p111
      %p118 = scmp.eq.s32.totalorder %s13, 1
      %p119 = por %p117, %p118
      %p120 = scmp.ne.s32.totalorder %s112, %s115
      %p121 = scmp.eq.s32.totalorder %s13, 0
      %p122 = por %p120, %p121
      %p123 = scmp.ne.s32.totalorder %s112, %s115
      %p124 = scmp.eq.s32.totalorder %s18, 1
      %p125 = por %p123, %p124
      %p126 = scmp.ne.s32.totalorder %s115, %s116
      %p127 = scmp.eq.s32.totalorder %s18, 0
      %p128 = por %p126, %p127
      %p129 = scmp.ne.s32.totalorder %s115, %s116
      %p130 = scmp.eq.s32.totalorder %s19, 1
      %p131 = por %p129, %p130
      %p133 = scmp.ne.s32.totalorder %s116, %s132
      %p134 = scmp.eq.s32.totalorder %s19, 0
      %p135 = por %p133, %p134
      %p136 = scmp.le.s32.totalorder 1, %s13
      %p137 = scmp.lt.s32.totalorder %s13, 3
      %p138 = pnand %p136, %p137
      %p139 = pneg %p138
      // Predicated region
      $region9: #{tpu_custom_call.1} parent=5 // pred_check
        _
      $region10: #{tpu_custom_call.1} parent=5 // pred_check_branch
        %141 = sbr.rel (%p138) target = $region12
      $region11: #{tpu_custom_call.1} parent=5 // pred_region
        %s142 = ssub.s32 %s13, 1
        // Predicated region
        $region13: #{tpu_custom_call.1} parent=11 // pred_check
          %p143 = pneg %p60
        $region14: #{tpu_custom_call.1} parent=11 // pred_check_branch
          %145 = sbr.rel (%p143) target = $region16
        $region15: #{tpu_custom_call.1} parent=11 // pred_region
          _
        $region16: #{tpu_custom_call.1} parent=11 // pred_fallthru
          _
        // Predicated region
        $region17: #{tpu_custom_call.1} parent=11 // pred_check
          %p146 = pneg %p81
        $region18: #{tpu_custom_call.1} parent=11 // pred_check_branch
          %148 = sbr.rel (%p146) target = $region20
        $region19: #{tpu_custom_call.1} parent=11 // pred_region
          _
        $region20: #{tpu_custom_call.1} parent=11 // pred_fallthru
          _
        // Predicated region
        $region21: #{tpu_custom_call.1} parent=11 // pred_check
          %p149 = pneg %p102
        $region22: #{tpu_custom_call.1} parent=11 // pred_check_branch
          %151 = sbr.rel (%p149) target = $region24
        $region23: #{tpu_custom_call.1} parent=11 // pred_region
          _
        $region24: #{tpu_custom_call.1} parent=11 // pred_fallthru
          _
      $region12: #{tpu_custom_call.1} parent=5 // pred_fallthru
        _
      %p152 = scmp.lt.s32.totalorder %s13, 2
      // Predicated region
      $region25: #{tpu_custom_call.1} parent=5 // pred_check
        %p153 = pneg %p152
      $region26: #{tpu_custom_call.1} parent=5 // pred_check_branch
        %155 = sbr.rel (%p153) target = $region28
      $region27: #{tpu_custom_call.1} parent=5 // pred_region
        // Predicated region
        $region29: #{tpu_custom_call.1} parent=27 // pred_check
          %p156 = pneg %p33
        $region30: #{tpu_custom_call.1} parent=27 // pred_check_branch
          %158 = sbr.rel (%p156) target = $region32
        $region31: #{tpu_custom_call.1} parent=27 // pred_region
          %p159 = scmp.lt.s32.totalorder %s13, 1
          %s160 = scalar_select %p159, %s13, 1
          %s161 = smul.addr %s160, 4
          %s162 = scalar_lea.vmem %s0, %s161
        $region32: #{tpu_custom_call.1} parent=27 // pred_fallthru
          _
      $region28: #{tpu_custom_call.1} parent=5 // pred_fallthru
        _
      %p163 = scmp.le.s32.totalorder 1, %s13
      %p164 = scmp.lt.s32.totalorder %s13, 3
      %p165 = pnand %p163, %p164
      %p166 = pneg %p165
      // Predicated region
      $region33: #{tpu_custom_call.1} parent=5 // pred_check
        _
      $region34: #{tpu_custom_call.1} parent=5 // pred_check_branch
        %168 = sbr.rel (%p165) target = $region36
      $region35: #{tpu_custom_call.1} parent=5 // pred_region
        %s169 = ssub.s32 %s13, 1
        %p170 = scmp.lt.s32.totalorder %s18, 1
        %s171 = scalar_select %p170, %s18, 1
        %s172 = smul.addr %s171, 4
        %s173 = scalar_lea.vmem %s0, %s172
        %p174 = pneg %p39
        %p175 = pneg %p36
        %p176 = pneg %p60
        %p177 = pneg %p57
        %p178 = pneg %p81
        %p179 = pneg %p78
        %p180 = pneg %p102
        %p181 = pneg %p99
        %p182 = pneg %p128
        %p183 = pneg %p125
        %s184 = sand.u32 %s115, 1
        %s185 = scalar_lea.sflag [#allocation3], %s184
        %s186 = sand.u32 %s115, 1
        %s187 = smul.addr %s186, 8
        %s188 = scalar_lea.vmem [#allocation2], %s187
        %p189 = scmp.lt.s32.totalorder %s18, 1
        %s190 = scalar_select %p189, %s18, 1
        %s191 = smul.addr %s190, 4
        %s192 = scalar_lea.vmem %s0, %s191
        %v193 = vld [vmem:[%s192] sm:$0xf]
        %v194 = vld [vmem:[%s1] sm:$0xf]
        %196 = vset.pattern.permute.xlu0 0
        %197 = vperm.xlu0 %196, %v194
        %v198 = vpop.permute.xlu0 %197
        %v200 = vmul.f32 %v193, %v198
        %201 = vset.pattern.permute.xlu0 1
        %202 = vperm.xlu0 %201, %v194
        %v203 = vpop.permute.xlu0 %202
        %v205 = vmul.f32 %v193, %v203
        %207 = vrot.lane.b32.xlu0 %v205, 127
        %v208 = vpop.permute.xlu0 %207
        %v210 = vadd.f32 %v200, %v208
        %211 = vset.pattern.permute.xlu0 2
        %212 = vperm.xlu0 %211, %v194
        %v213 = vpop.permute.xlu0 %212
        %v215 = vmul.f32 %v193, %v213
        %217 = vrot.lane.b32.xlu0 %v215, 126
        %v218 = vpop.permute.xlu0 %217
        %v220 = vadd.f32 %v210, %v218
        %v221 = vld [vmem:[%s2] sm:$0xff]
        %223 = vset.pattern.permute.xlu0 0
        %224 = vperm.xlu0 %223, %v221
        %v225 = vpop.permute.xlu0 %224
        %v227 = vperm.slane %v220, 0
        %v228 = vmul.f32 %v225, %v227
        %v229 = vadd.f32 %v228, 0.0
        %230 = vset.pattern.permute.xlu0 1
        %231 = vperm.xlu0 %230, %v221
        %v232 = vpop.permute.xlu0 %231
        %v234 = vperm.slane %v220, 1
        %v235 = vmul.f32 %v232, %v234
        %v236 = vadd.f32 %v229, %v235
        %237 = vset.pattern.permute.xlu0 2
        %238 = vperm.xlu0 %237, %v221
        %v239 = vpop.permute.xlu0 %238
        %v241 = vperm.slane %v220, 2
        %v242 = vmul.f32 %v239, %v241
        %v243 = vadd.f32 %v236, %v242
        %244 = vset.pattern.permute.xlu0 3
        %245 = vperm.xlu0 %244, %v221
        %v246 = vpop.permute.xlu0 %245
        %v248 = vperm.slane %v220, 3
        %v249 = vmul.f32 %v246, %v248
        %v250 = vadd.f32 %v243, %v249
        %v251 = vld [vmem:[%s3] sm:$0xff]
        %253 = vset.pattern.permute.xlu0 0
        %254 = vperm.xlu0 %253, %v251
        %v255 = vpop.permute.xlu0 %254
        %v257 = vadd.f32 %v250, %v255
        %vm258 = vcmask 113664
        %259 = vst.msk [vmem:[%s188] sm:$0xff] %vm258, %v257
        %s260 = sand.u32 %s115, 1
        %s261 = scalar_lea.sflag [#allocation3], %s260
        %s262 = sand.u32 %s115, 1
        %s263 = smul.addr %s262, 8
        %s264 = scalar_lea.vmem [#allocation2], %s263
        // Predicated region
        $region37: #{tpu_custom_call.1} parent=35 // pred_check
          %p265 = pneg %p125
        $region38: #{tpu_custom_call.1} parent=35 // pred_check_branch
          %267 = sbr.rel (%p265) target = $region40
        $region39: #{tpu_custom_call.1} parent=35 // pred_region
          %269 = vsyncadd %s261, 0
          %s270 = smul.addr %s18, 8
          %s271 = scalar_lea.hbm %s4, %s270
          %s273 = sshll.u32 %s264, 4
          %s274 = int_to_ptr.vmem [resolvable:$true] %s273
          %s275 = sshll.u32 %s271, 4
          %s276 = int_to_ptr.hbm [resolvable:$true] %s275
          %278 = dma.vmem_to_hbm [thread:$0]  %s274, 128, %s276, %s261
        $region40: #{tpu_custom_call.1} parent=35 // pred_fallthru
          _
      $region36: #{tpu_custom_call.1} parent=5 // pred_fallthru
        _
      %p279 = scmp.le.s32.totalorder 2, %s13
      // Predicated region
      $region41: #{tpu_custom_call.1} parent=5 // pred_check
        %p280 = pneg %p279
      $region42: #{tpu_custom_call.1} parent=5 // pred_check_branch
        %282 = sbr.rel (%p280) target = $region44
      $region43: #{tpu_custom_call.1} parent=5 // pred_region
        %s283 = ssub.s32 %s13, 2
        // Predicated region
        $region45: #{tpu_custom_call.1} parent=43 // pred_check
          %p284 = pneg %p131
        $region46: #{tpu_custom_call.1} parent=43 // pred_check_branch
          %286 = sbr.rel (%p284) target = $region48
        $region47: #{tpu_custom_call.1} parent=43 // pred_region
          %s287 = sand.u32 %s116, 1
          %s288 = scalar_lea.sflag [#allocation3], %s287
          %s289 = sand.u32 %s116, 1
          %s290 = smul.addr %s289, 8
          %s291 = scalar_lea.vmem [#allocation2], %s290
          %293 = dma.done %s288, 128
        $region48: #{tpu_custom_call.1} parent=43 // pred_fallthru
          _
      $region44: #{tpu_custom_call.1} parent=5 // pred_fallthru
        _
    $region6: #{tpu_custom_call.1} parent=1 // loop_footer
      %s17 = sadd.s32 1, %s13
    $region7: #{tpu_custom_call.1} parent=1 // loop_footer_branch
      %12 = sbr.rel target = $region3
    $region8: #{tpu_custom_call.1} parent=1 // loop_exit
      _
    %294 = vsyncpa [#allocation3], 1
    %s295 = scalar_lea.sflag [#allocation3], 1
    %296 = vsyncpa %s295, 1

</llo_original>
